<compile_context>
chip_gen: v5e
topology: v5e:2x2
jax: 0.10.0
libtpu: 0.0.40
codegen_flags: <defaults>
</compile_context>

<pallas_src>
import functools
import math

import jax
import jax.numpy as jnp
from jax.experimental import pallas as pl
from jax.experimental.pallas import tpu as pltpu


def _snake_kernel(x_ref, p_ref, o_ref, *, beta):
    # x_ref: (block_rows, cols)   input tile (any float dtype)
    # p_ref: (2, cols) f32, grid-invariant: row0 = 2*a, row1 = 0.5/a
    x = x_ref[...].astype(jnp.float32)
    a2 = p_ref[0:1, :]          # (1, cols), broadcasts over rows (sublanes)
    h = p_ref[1:2, :]           # (1, cols)
    c = jnp.cos(x * a2)
    xb = x if beta == 1.0 else beta * x
    o_ref[...] = (xb + (h - h * c)).astype(o_ref.dtype)


def _choose_fold(M, F, target_lanes):
    """Largest r with M % r == 0 and (r*F) % 128 == 0, r*F ~<= target_lanes.

    Returns 1 if no fold is needed (F already lane-dense / wide) or none exists.
    """
    if F % 128 == 0 or F >= target_lanes:
        return 1
    base = 128 // math.gcd(F, 128)            # minimum fold for lane density
    max_r = max(base, (max(1, target_lanes // F) // base) * base)
    r = max_r
    while r >= base:
        if M % r == 0:
            return r
        r -= base
    return 1                                  # copy-free fallback (lane-sparse)


def _round_up(v, m):
    return (v + m - 1) // m * m


def snake(x, a, *, beta=1.0, target_block_bytes=4 << 20, target_lanes=512,
          min_grid_steps=4):
    """Snake activation.  x: (..., F) features-last; a: (F,)."""
    orig_shape = x.shape
    orig_dtype = x.dtype
    F = orig_shape[-1]
    assert a.shape == (F,), f"a must have shape ({F},), got {a.shape}"
    M = math.prod(orig_shape[:-1])            # leading (row) extent

    # Lane-fold the feature axis without any padding: (M, F) -> (rows, cols).
    # Since cols % F == 0, flat-index -> feature mapping is preserved exactly.
    r = _choose_fold(M, F, target_lanes)
    rows, cols = M // r, F * r
    x2 = x.reshape(rows, cols)                # contiguous reshape: free, no copy

    # Packed per-feature params (always f32): row0 = 2*a, row1 = 0.5/a.
    a_t = jnp.tile(a.astype(jnp.float32), r)  # (cols,)
    params = jnp.stack([2.0 * a_t, 0.5 / a_t], axis=0)   # (2, cols)

    # Row-block size: ~target_block_bytes per block (scales with dtype), but
    # keep >= min_grid_steps grid steps so v7x megacore gets both TCs busy and
    # the in/out pipeline stays overlapped.  Last block may be partial.
    itemsize = jnp.dtype(orig_dtype).itemsize
    rows_by_bytes = max(8, (target_block_bytes // (cols * itemsize)) // 8 * 8)
    if rows <= 16:
        br = rows                             # tiny input: one full-extent block
    else:
        rows_by_steps = max(8, _round_up(pl.cdiv(rows, min_grid_steps), 8))
        br = min(rows_by_bytes, rows_by_steps)
    grid = (pl.cdiv(rows, br),)               # partial last block: Pallas clamps

    kernel = functools.partial(_snake_kernel, beta=float(beta))
    out = pl.pallas_call(
        kernel,
        out_shape=jax.ShapeDtypeStruct((rows, cols), orig_dtype),
        grid_spec=pltpu.PrefetchScalarGridSpec(
            num_scalar_prefetch=0,
            grid=grid,
            in_specs=[
                pl.BlockSpec((br, cols), lambda i: (i, 0)),
                pl.BlockSpec((2, cols), lambda i: (0, 0)),   # grid-invariant
            ],
            out_specs=pl.BlockSpec((br, cols), lambda i: (i, 0)),
        ),
        compiler_params=pltpu.CompilerParams(
            # double-buffered 4 MiB in + 4 MiB out ~= 16 MiB < 32 MiB limit,
            # safe on v5e/v6e/v7x; "parallel" lets v7x shard the grid over TCs.
            dimension_semantics=("parallel",),
            vmem_limit_bytes=32 << 20,
        ),
    )(x2, params)

    return out.reshape(orig_shape)            # free reshape: no padding to strip


if __name__ == "__main__":
    # Module config: Snake(in_features=32, a=None, beta=1)
    # a=None -> a ~ Exponential(rate=0.1); sampled deterministically here.
    in_features = 32
    beta = 1.0

    key = jax.random.PRNGKey(0)
    k_a, k_x = jax.random.split(key)
    # Exponential with rate 0.1 == standard exponential / 0.1
    a_param = jax.random.exponential(k_a, (in_features,), dtype=jnp.float32) / 0.1

    def ref_fn(xv):
        xf = xv.astype(jnp.float32)
        return (beta * xf + (1.0 / a_param) * jnp.sin(xf * a_param) ** 2
                ).astype(xv.dtype)

    # 1) Small shape, lane-folded, single-block path: (batch=2, seq=8, feat=32).
    x = jax.random.normal(k_x, (2, 8, in_features), dtype=jnp.float32)
    y = jax.block_until_ready(snake(x, a_param, beta=beta))
    assert y.shape == x.shape and y.dtype == x.dtype
    assert jnp.allclose(y, ref_fn(x), atol=5e-5, rtol=1e-5), "f32 mismatch"

    # 2) bf16, lane-folded, multi-step grid with a partial last block
    #    (rows=250, cols=384, 4 grid steps) -- no padding, no output slice.
    xb = jax.random.normal(jax.random.PRNGKey(1), (3, 1000, in_features),
                           dtype=jnp.bfloat16)
    yb = jax.block_until_ready(snake(xb, a_param, beta=beta))
    assert yb.shape == xb.shape and yb.dtype == xb.dtype
    assert jnp.allclose(yb.astype(jnp.float32), ref_fn(xb).astype(jnp.float32),
                        atol=2e-2, rtol=2e-2), "bf16 mismatch"

    # 3) Shape where no fold divides M (M=35): copy-free unfolded fallback with
    #    a partial last row-block.
    xc = jax.random.normal(jax.random.PRNGKey(2), (5, 7, in_features),
                           dtype=jnp.float32)
    yc = jax.block_until_ready(snake(xc, a_param, beta=beta))
    assert jnp.allclose(yc, ref_fn(xc), atol=5e-5, rtol=1e-5), "fallback mismatch"

    print("KERNEL_OK")
</pallas_src>

<mosaic_0001>
module attributes {stable_mosaic.version = 11 : i64} {
  func.func @_snake_kernel(%arg0: i32, %arg1: memref<1x512xf32, #tpu.memory_space<vmem>>, %arg2: memref<2x512xf32, #tpu.memory_space<vmem>>, %arg3: memref<1x512xf32, #tpu.memory_space<vmem>>) attributes {dimension_semantics = [#tpu.dimension_semantics<parallel>], iteration_bounds = array<i64: 1>, scalar_prefetch = 0 : i64, scratch_operands = 0 : i64, tpu.core_type = #tpu.core_type<tc>, window_params = [{transform_indices = @transform_0, window_bounds = array<i64: 1, 512>}, {pipeline_mode = #tpu.pipeline_mode<synchronous>, transform_indices = @transform_1, window_bounds = array<i64: 2, 512>}, {transform_indices = @transform_2, window_bounds = array<i64: 1, 512>}]} {
    %c0 = arith.constant 0 : index
    %c0_0 = arith.constant 0 : index
    %0 = vector.load %arg1[%c0, %c0_0] : memref<1x512xf32, #tpu.memory_space<vmem>>, vector<1x512xf32>
    %c0_1 = arith.constant 0 : index
    %c0_2 = arith.constant 0 : index
    %1 = vector.load %arg2[%c0_1, %c0_2] : memref<2x512xf32, #tpu.memory_space<vmem>>, vector<1x512xf32>
    %c1 = arith.constant 1 : index
    %c0_3 = arith.constant 0 : index
    %2 = vector.load %arg2[%c1, %c0_3] : memref<2x512xf32, #tpu.memory_space<vmem>>, vector<1x512xf32>
    %3 = arith.mulf %0, %1 : vector<1x512xf32>
    %4 = math.cos %3 : vector<1x512xf32>
    %5 = arith.mulf %2, %4 : vector<1x512xf32>
    %6 = arith.subf %2, %5 : vector<1x512xf32>
    %7 = arith.addf %0, %6 : vector<1x512xf32>
    %c0_4 = arith.constant 0 : index
    %c0_5 = arith.constant 0 : index
    %8 = vector.load %arg3[%c0_4, %c0_5] : memref<1x512xf32, #tpu.memory_space<vmem>>, vector<1x512xf32>
    tpu.vector_store %arg3[%c0_4, %c0_5], %7 {strides = array<i32>} : memref<1x512xf32, #tpu.memory_space<vmem>>, vector<1x512xf32>,
    return
  }
  func.func @transform_0(%arg0: i32) -> (i32, i32) {
    %c0_i32 = arith.constant 0 : i32
    %c0_i32_0 = arith.constant 0 : i32
    return %arg0, %c0_i32 : i32, i32
  }
  func.func @transform_1(%arg0: i32) -> (i32, i32) {
    %c0_i32 = arith.constant 0 : i32
    %c0_i32_0 = arith.constant 0 : i32
    %c0_i32_1 = arith.constant 0 : i32
    return %c0_i32, %c0_i32_0 : i32, i32
  }
  func.func @transform_2(%arg0: i32) -> (i32, i32) {
    %c0_i32 = arith.constant 0 : i32
    %c0_i32_0 = arith.constant 0 : i32
    return %arg0, %c0_i32 : i32, i32
  }
}

</mosaic_0001>

<llo_original>
// kernel: tpu_custom_call.1
$region0: #{tpu_custom_call.1}
  #allocation0 [shape = 'u32[]', space=smem, size = 0x4, offset = 0x4, fixed_abs, tag = 'smem constant byte address 0x4 - core index']
  #allocation1 [shape = 'u32[72,128]{1,0:T(1,128)}', space=vmem, size = 0x9000, scoped, tag = 'internal scratch']
  %s0 = inlined_call_operand.hbm [shape: f32[1,512], index: 0, kind: input, shape index: {}]
  %s1 = inlined_call_operand.hbm [shape: f32[2,512], index: 1, kind: input, shape index: {}]
  %s2 = inlined_call_operand.hbm [shape: f32[1,512], index: 2, kind: output, shape index: {}]
  %s3 = sld [smem:[#allocation0]]
  $region26: #{tpu_custom_call.1} parent=0
    _
  %s5 = ssub.s32 1, %s3
  %s6 = scalar_select 0, %s5, %s3
  $region1: #{tpu_custom_call.1} parent=0
    #allocation2 [shape = 'u8[2048]{0}', space=vmem, size = 0x800, scoped, tag = 'input window, operand 0, single buffered']
    #allocation3 [shape = 's32[1]{0}', space=sflag, size = 0x4, scoped, tag = 'scoped memory for tpu_custom_call.1']
    #allocation4 [shape = 's32[1]{0}', space=sflag, size = 0x4, scoped, tag = 'scoped memory for tpu_custom_call.1']
    #allocation5 [shape = 'u8[4096]{0}', space=vmem, size = 0x1000, scoped, tag = 'input window, operand 1, single buffered']
    #allocation6 [shape = 's32[1]{0}', space=sflag, size = 0x4, scoped, tag = 'scoped memory for tpu_custom_call.1']
    #allocation7 [shape = 'u8[2048]{0}', space=vmem, size = 0x800, scoped, tag = 'output window, operand 0, single buffered']
    %7 = vsyncpa [#allocation3], 0
    %8 = vsyncpa [#allocation6], 0
    %9 = vsyncpa [#allocation4], 0
    // Predicated region
    $region2: #{tpu_custom_call.1} parent=1 // pred_check
      _
    $region3: #{tpu_custom_call.1} parent=1 // pred_check_branch
      %11 = sbr.rel (0) target = $region5
    $region4: #{tpu_custom_call.1} parent=1 // pred_region
      %13 = vsyncadd [#allocation3], 0
      %s15 = sshll.u32 %s0, 4
      %s16 = int_to_ptr.hbm [resolvable:$true] %s15
      %s17 = sshll.u32 [#allocation2], 4
      %s18 = int_to_ptr.vmem [resolvable:$true] %s17
      %20 = dma.hbm_to_vmem [thread:$0]  %s16, 64, %s18, [#allocation3]
    $region5: #{tpu_custom_call.1} parent=1 // pred_fallthru
      _
    // Predicated region
    $region6: #{tpu_custom_call.1} parent=1 // pred_check
      _
    $region7: #{tpu_custom_call.1} parent=1 // pred_check_branch
      %22 = sbr.rel (0) target = $region9
    $region8: #{tpu_custom_call.1} parent=1 // pred_region
      %24 = vsyncadd [#allocation6], 0
      %s26 = sshll.u32 %s1, 4
      %s27 = int_to_ptr.hbm [resolvable:$true] %s26
      %s28 = sshll.u32 [#allocation5], 4
      %s29 = int_to_ptr.vmem [resolvable:$true] %s28
      %31 = dma.hbm_to_vmem [thread:$0]  %s27, 128, %s29, [#allocation6]
    $region9: #{tpu_custom_call.1} parent=1 // pred_fallthru
      _
    // Predicated region
    $region10: #{tpu_custom_call.1} parent=1 // pred_check
      _
    $region11: #{tpu_custom_call.1} parent=1 // pred_check_branch
      %33 = sbr.rel (0) target = $region13
    $region12: #{tpu_custom_call.1} parent=1 // pred_region
      %35 = dma.done [#allocation3], 64
    $region13: #{tpu_custom_call.1} parent=1 // pred_fallthru
      _
    // Predicated region
    $region14: #{tpu_custom_call.1} parent=1 // pred_check
      _
    $region15: #{tpu_custom_call.1} parent=1 // pred_check_branch
      %37 = sbr.rel (0) target = $region17
    $region16: #{tpu_custom_call.1} parent=1 // pred_region
      %39 = dma.done [#allocation6], 128
    $region17: #{tpu_custom_call.1} parent=1 // pred_fallthru
      _
    %v40 = vld [vmem:[#allocation2] sm:$0xf]
    %v41 = vld [vmem:[#allocation5] ss:$2 sm:$0xf]
    %s42 = scalar_lea.vmem [#allocation5], 1
    %v43 = vld [vmem:[%s42] ss:$2 sm:$0xf]
    %v44 = vmul.f32 %v40, %v41
    %v45 = vand.u32 2147483647, %v44
    %vm46 = vcmp.le.f32.partialorder %v45, 0.7853982
    %vm47 = vcmp.lt.s32.totalorder %v44, 0
    %v48 = vand.u32 %v44, 2139095040
    %v49 = vshrl.u32 %v48, 23
    %v50 = vsub.s32 %v49, 127
    %v51 = vand.u32 2147483647, %v44
    %v52 = vand.u32 %v51, 8388607
    %v53 = vor.u32 %v52, 8388608
    %v54 = vsub.s32 0, %v53
    %v55 = vadd.s32 %v50, 1
    %vm56 = vcmp.gt.s32.totalorder %v55, 0
    %v57 = vsel %vm56, %v55, 0
    %v58 = vshrl.u32 %v57, 5
    %v59 = vand.u32 %v57, 31
    %v60 = vsub.s32 32, %v59
    %v61 = vshrl.u32 683565275, %v60
    %v62 = vshll.u32 683565275, %v59
    %v63 = vshrl.u32 2475754826, %v60
    %v64 = vor.u32 %v62, %v63
    %v65 = vshll.u32 2475754826, %v59
    %v66 = vshrl.u32 2131351028, %v60
    %v67 = vor.u32 %v65, %v66
    %v68 = vshll.u32 2131351028, %v59
    %v69 = vshrl.u32 2102212464, %v60
    %v70 = vor.u32 %v68, %v69
    %v71 = vshll.u32 2102212464, %v59
    %v72 = vshrl.u32 920167782, %v60
    %v73 = vor.u32 %v71, %v72
    %v74 = vshll.u32 920167782, %v59
    %v75 = vshrl.u32 1326507024, %v60
    %v76 = vor.u32 %v74, %v75
    %vm77 = vcmp.lt.s32.totalorder %v58, 1
    %vm78 = vcmp.lt.s32.totalorder %v58, 2
    %vm79 = vcmp.lt.s32.totalorder %v58, 3
    %vm80 = vcmp.lt.s32.totalorder %v58, 4
    %v81 = vsel %vm77, %v61, %v64
    %v82 = vsel %vm80, %v70, 2102212464
    %v83 = vsel %vm79, %v67, %v82
    %v84 = vsel %vm78, %v81, %v83
    %v85 = vsel %vm77, %v64, %v67
    %v86 = vsel %vm80, %v73, 920167782
    %v87 = vsel %vm79, %v70, %v86
    %v88 = vsel %vm78, %v85, %v87
    %v89 = vsel %vm77, %v67, %v70
    %v90 = vsel %vm80, %v76, 1326507024
    %v91 = vsel %vm79, %v73, %v90
    %v92 = vsel %vm78, %v89, %v91
    %v93 = vshll.u32 %v53, 8
    %v94 = vand.u32 %v93, 65535
    %v95 = vshrl.u32 %v93, 16
    %v96 = vand.u32 %v92, 65535
    %v97 = vshrl.u32 %v92, 16
    %v98 = vmul.u32 %v94, %v96
    %v99 = vmul.u32 %v94, %v97
    %v100 = vmul.u32 %v95, %v96
    %v101 = vmul.u32 %v95, %v97
    %v102 = vshll.u32 %v99, 16
    %v103 = vshrl.u32 %v99, 16
    %v104 = vshll.u32 %v100, 16
    %v105 = vshrl.u32 %v100, 16
    %vm106 = vc.u32 %v98, %v102
    %v107 = vsel %vm106, 1, 0
    %v108 = vadd.s32 %v98, %v102
    %v109 = vadd.s32 %v101, %v107
    %vm110 = vc.u32 %v108, %v104
    %v111 = vsel %vm110, 1, 0
    %v112 = vadd.s32 %v108, %v104
    %v113 = vadd.s32 %v109, %v111
    %v114 = vadd.s32 %v113, %v103
    %v115 = vadd.s32 %v114, %v105
    %v116 = vand.u32 %v93, 65535
    %v117 = vshrl.u32 %v93, 16
    %v118 = vand.u32 %v88, 65535
    %v119 = vshrl.u32 %v88, 16
    %v120 = vmul.u32 %v116, %v118
    %v121 = vmul.u32 %v116, %v119
    %v122 = vmul.u32 %v117, %v118
    %v123 = vmul.u32 %v117, %v119
    %v124 = vshll.u32 %v121, 16
    %v125 = vshrl.u32 %v121, 16
    %v126 = vshll.u32 %v122, 16
    %v127 = vshrl.u32 %v122, 16
    %vm128 = vc.u32 %v120, %v124
    %v129 = vsel %vm128, 1, 0
    %v130 = vadd.s32 %v120, %v124
    %v131 = vadd.s32 %v123, %v129
    %vm132 = vc.u32 %v130, %v126
    %v133 = vsel %vm132, 1, 0
    %v134 = vadd.s32 %v130, %v126
    %v135 = vadd.s32 %v131, %v133
    %v136 = vadd.s32 %v135, %v125
    %v137 = vadd.s32 %v136, %v127
    %v138 = vmul.u32 %v93, %v84
    %v139 = vadd.s32 %v115, %v134
    %vm140 = vc.u32 %v115, %v134
    %v141 = vadd.s32 %v137, 1
    %v142 = vsel %vm140, %v141, %v137
    %v143 = vadd.s32 %v138, %v142
    %v144 = vadd.s32 %v143, 536870912
    %v145 = vshrl.u32 %v144, 30
    %v146 = vshll.u32 %v145, 30
    %v147 = vsub.s32 %v143, %v146
    %vm148 = vcmp.lt.s32.totalorder %v147, 0
    %v149 = vsub.s32 0, %v147
    %v150 = vsel %vm148, %v149, %v147
    %v151 = vclz %v150
    %v152 = vsub.s32 %v151, 2
    %vm153 = vcmp.gt.s32.totalorder 0, %v152
    %v154 = vsel %vm153, 0, %v152
    %v155 = vsub.s32 32, %v154
    %v156 = vshll.u32 %v147, %v154
    %v157 = vshrl.u32 %v139, %v155
    %v158 = vor.u32 %v156, %v157
    %v159 = vsub.s32 4294967266, %v154
    %v160 = vadd.s32 %v159, 127
    %v161 = vshll.u32 %v160, 23
    %v162 = vor.u32 4788187, %v161
    %v163 = vand.u32 2147483647, %v162
    %v165 = vcvt.s32.f32 %v158
    %v166 = vmul.f32 %v165, %v163
    %v167 = vxor.u32 %v166, 2147483648
    %v168 = vsel %vm47, %v167, %v166
    %v169 = vsub.s32 4, %v145
    %v170 = vsel %vm47, %v169, %v145
    %v171 = vsel %vm46, %v44, %v168
    %v172 = vsel %vm46, 0, %v170
    %v173 = vmul.f32 %v171, %v171
    %v174 = vmul.f32 %v173, -0.001358992
    %v175 = vadd.f32 %v174, 0.041655596
    %v176 = vmul.f32 %v173, %v175
    %v177 = vadd.f32 %v176, -0.4999988
    %v178 = vmul.f32 %v173, %v177
    %v179 = vadd.f32 1.0, %v178
    %v180 = vmul.f32 %v171, %v171
    %v181 = vmul.f32 %v180, -0.00019511016
    %v182 = vadd.f32 %v181, 0.008332121
    %v183 = vmul.f32 %v180, %v182
    %v184 = vadd.f32 %v183, -0.16666654
    %v185 = vmul.f32 %v180, %v184
    %v186 = vadd.f32 %v185, 1.0
    %v187 = vmul.f32 %v186, %v171
    %vm188 = vweird.f32 %v44
    %v189 = vand.u32 %v172, 3
    %vm190 = vcmp.lt.s32.totalorder %v189, 2
    %vm191 = vcmp.eq.s32.totalorder %v189, 0
    %v192 = vxor.u32 %v187, 2147483648
    %v193 = vsel %vm191, %v179, %v192
    %vm194 = vcmp.eq.s32.totalorder %v189, 2
    %v195 = vxor.u32 %v179, 2147483648
    %v196 = vsel %vm194, %v195, %v187
    %v197 = vsel %vm190, %v193, %v196
    %v198 = vsel %vm188, nan, %v197
    %v199 = vmul.f32 %v43, %v198
    %v200 = vsub.f32 %v43, %v199
    %v201 = vadd.f32 %v40, %v200
    %v202 = vlaneseq
    %vm203 = vcmp.ge.s32.totalorder %v202, 0
    %vm204 = vcmp.lt.s32.totalorder %v202, 512
    %vm205 = vmand %vm203, %vm204
    %206 = vst.msk [vmem:[#allocation7] sm:$0xf] %vm205, %v201
    // Predicated region
    $region18: #{tpu_custom_call.1} parent=1 // pred_check
      _
    $region19: #{tpu_custom_call.1} parent=1 // pred_check_branch
      %208 = sbr.rel (0) target = $region21
    $region20: #{tpu_custom_call.1} parent=1 // pred_region
      %210 = vsyncadd [#allocation4], 0
      %s212 = sshll.u32 [#allocation7], 4
      %s213 = int_to_ptr.vmem [resolvable:$true] %s212
      %s214 = sshll.u32 %s2, 4
      %s215 = int_to_ptr.hbm [resolvable:$true] %s214
      %217 = dma.vmem_to_hbm [thread:$0]  %s213, 64, %s215, [#allocation4]
    $region21: #{tpu_custom_call.1} parent=1 // pred_fallthru
      _
    // Predicated region
    $region22: #{tpu_custom_call.1} parent=1 // pred_check
      _
    $region23: #{tpu_custom_call.1} parent=1 // pred_check_branch
      %219 = sbr.rel (0) target = $region25
    $region24: #{tpu_custom_call.1} parent=1 // pred_region
      %221 = dma.done [#allocation4], 64
    $region25: #{tpu_custom_call.1} parent=1 // pred_fallthru
      _
    %222 = vsyncpa [#allocation3], 1
    %223 = vsyncpa [#allocation6], 1
    %224 = vsyncpa [#allocation4], 1

</llo_original>
